<compile_context>
chip_gen: v6e
topology: v6e:2x2x1
jax: 0.10.0
libtpu: 0.0.40
codegen_flags: <defaults>
</compile_context>

<pallas_src>
import functools

import jax
import jax.numpy as jnp
from jax.experimental import pallas as pl
from jax.experimental.pallas import tpu as pltpu


def _mlp_kernel(x_ref, w1_ref, b1_ref, w2_ref, b2_ref, w3_ref, b3_ref, o_ref):
    # In-kernel f32 -> bf16 cast of the x tile (hidden under the DMA).
    x = x_ref[...].astype(jnp.bfloat16)
    # fc1 + ReLU: bf16 MXU inputs, f32 accumulation, f32 bias/ReLU.
    h1 = jnp.dot(x, w1_ref[...], preferred_element_type=jnp.float32)
    h1 = jnp.maximum(h1 + b1_ref[...], 0.0)
    # fc2 + ReLU
    h2 = jnp.dot(h1.astype(jnp.bfloat16), w2_ref[...],
                 preferred_element_type=jnp.float32)
    h2 = jnp.maximum(h2 + b2_ref[...], 0.0)
    # fc3 (logits, no activation)
    out = jnp.dot(h2.astype(jnp.bfloat16), w3_ref[...],
                  preferred_element_type=jnp.float32)
    o_ref[...] = (out + b3_ref[...]).astype(o_ref.dtype)


# 4096 rows/step: ~20 MiB of (lane-padded, double-buffered) VMEM live, which
# fits v5e/v6e (128 MiB) and v7x (64 MiB physical) with the explicit
# vmem_limit_bytes below, while making the x DMA per step large enough that
# the ~0.35 us grid-step overhead is amortized away.
_BLOCK_B_CAP = 4096
_VMEM_LIMIT_BYTES = 48 * 1024 * 1024


def _round_up(n, m):
    return ((n + m - 1) // m) * m


def _pick_block_b(batch):
    """Largest useful batch tile: the whole (16-rounded) batch when it fits the
    cap (single grid step -- no artificial split on single-TC v5e/v6e),
    otherwise the 4096-row cap.  Always a multiple of 16."""
    return min(_BLOCK_B_CAP, _round_up(batch, 16))


@functools.partial(jax.jit, static_argnames=("block_b",))
def phishing_model_forward(x, params, block_b=None):
    """Fused 3-layer MLP forward on TPU via Pallas.

    x: [B, F] float32 (any B; ragged last block is masked by Pallas).
    params: dict with w1[F,64], b1[1,64], w2[64,32], b2[1,32], w3[32,2], b3[1,2].
    Returns [B, 2] float32 logits.
    """
    w1, b1 = params["w1"], params["b1"]
    w2, b2 = params["w2"], params["b2"]
    w3, b3 = params["w3"], params["b3"]
    B, F = x.shape
    n_out = w3.shape[1]

    if block_b is None:
        block_b = _pick_block_b(B)
    else:
        # Sanitize caller-supplied tile: multiple of 16, no larger than needed.
        block_b = max(16, min(_round_up(block_b, 16), _round_up(B, 16)))
    grid_b = pl.cdiv(B, block_b)

    # Weights are tiny (few KiB) -- casting them to bf16 in the wrapper is
    # negligible; biases stay f32 for the f32 bias-add/ReLU path.
    w1_bf = w1.astype(jnp.bfloat16)
    w2_bf = w2.astype(jnp.bfloat16)
    w3_bf = w3.astype(jnp.bfloat16)

    # Weights/biases are fully VMEM-resident (constant index_map => no re-DMA).
    weight_spec = lambda shape: pl.BlockSpec(shape, lambda i: (0, 0))

    out = pl.pallas_call(
        _mlp_kernel,
        out_shape=jax.ShapeDtypeStruct((B, n_out), jnp.float32),
        grid_spec=pltpu.PrefetchScalarGridSpec(
            num_scalar_prefetch=0,
            grid=(grid_b,),
            in_specs=[
                pl.BlockSpec((block_b, F), lambda i: (i, 0)),  # x tile (f32)
                weight_spec(w1_bf.shape),
                weight_spec(b1.shape),
                weight_spec(w2_bf.shape),
                weight_spec(b2.shape),
                weight_spec(w3_bf.shape),
                weight_spec(b3.shape),
            ],
            out_specs=pl.BlockSpec((block_b, n_out), lambda i: (i, 0)),
        ),
        compiler_params=pltpu.CompilerParams(
            dimension_semantics=("parallel",),
            vmem_limit_bytes=_VMEM_LIMIT_BYTES,
        ),
    )(x, w1_bf, b1, w2_bf, b2, w3_bf, b3)
    return out


def init_params(key, input_size):
    """Deterministic synthetic parameters matching PhishingModel.__init__ shapes."""
    ks = jax.random.split(key, 6)

    def lin(kw, kb, fan_in, fan_out):
        bound = 1.0 / jnp.sqrt(fan_in)
        w = jax.random.uniform(kw, (fan_in, fan_out), jnp.float32, -bound, bound)
        b = jax.random.uniform(kb, (1, fan_out), jnp.float32, -bound, bound)
        return w, b

    w1, b1 = lin(ks[0], ks[1], input_size, 64)
    w2, b2 = lin(ks[2], ks[3], 64, 32)
    w3, b3 = lin(ks[4], ks[5], 32, 2)
    return {"w1": w1, "b1": b1, "w2": w2, "b2": b2, "w3": w3, "b3": b3}


def reference_forward(x, p):
    """Reference with the same precision recipe (bf16 matmul inputs, f32 accum)."""
    h = jnp.dot(x.astype(jnp.bfloat16), p["w1"].astype(jnp.bfloat16),
                preferred_element_type=jnp.float32)
    h = jnp.maximum(h + p["b1"], 0.0)
    h = jnp.dot(h.astype(jnp.bfloat16), p["w2"].astype(jnp.bfloat16),
                preferred_element_type=jnp.float32)
    h = jnp.maximum(h + p["b2"], 0.0)
    out = jnp.dot(h.astype(jnp.bfloat16), p["w3"].astype(jnp.bfloat16),
                  preferred_element_type=jnp.float32)
    return out + p["b3"]


if __name__ == "__main__":
    key = jax.random.PRNGKey(0)
    k_x, k_p = jax.random.split(key)

    input_size = 32   # number of phishing features
    batch = 250       # intentionally ragged: exercises the masked partial block
    x = jax.random.normal(k_x, (batch, input_size), jnp.float32)
    params = init_params(k_p, input_size)

    # Auto-picked tile: block_b=256, grid=(1,) -> single step, ragged rows masked.
    out = phishing_model_forward(x, params)
    out = jax.block_until_ready(out)

    ref = reference_forward(x, params)
    assert out.shape == (batch, 2), out.shape
    assert jnp.allclose(out, ref, atol=1e-2, rtol=1e-2), "mismatch vs reference"

    # Explicit (and deliberately awkward) block_b path: sanitized to a multiple
    # of 16, multi-step grid, ragged last block.
    out_tiled = phishing_model_forward(x, params, block_b=100)
    out_tiled = jax.block_until_ready(out_tiled)
    assert jnp.allclose(out_tiled, ref, atol=1e-2, rtol=1e-2), "tiled mismatch"

    # Tiny-batch path (block bigger than the batch, single partial block).
    out_small = phishing_model_forward(x[:8], params)
    out_small = jax.block_until_ready(out_small)
    assert jnp.allclose(out_small, ref[:8], atol=1e-2, rtol=1e-2), "small-batch mismatch"

    print("KERNEL_OK")
</pallas_src>

<mosaic_0001>
module attributes {stable_mosaic.version = 11 : i64} {
  func.func @_mlp_kernel(%arg0: i32, %arg1: memref<256x32xf32, #tpu.memory_space<vmem>>, %arg2: memref<32x64xbf16, #tpu.memory_space<vmem>>, %arg3: memref<1x64xf32, #tpu.memory_space<vmem>>, %arg4: memref<64x32xbf16, #tpu.memory_space<vmem>>, %arg5: memref<1x32xf32, #tpu.memory_space<vmem>>, %arg6: memref<32x2xbf16, #tpu.memory_space<vmem>>, %arg7: memref<1x2xf32, #tpu.memory_space<vmem>>, %arg8: memref<256x2xf32, #tpu.memory_space<vmem>>) attributes {dimension_semantics = [#tpu.dimension_semantics<parallel>], iteration_bounds = array<i64: 1>, scalar_prefetch = 0 : i64, scratch_operands = 0 : i64, tpu.core_type = #tpu.core_type<tc>, window_params = [{transform_indices = @transform_0, window_bounds = array<i64: 256, 32>}, {pipeline_mode = #tpu.pipeline_mode<synchronous>, transform_indices = @transform_1, window_bounds = array<i64: 32, 64>}, {pipeline_mode = #tpu.pipeline_mode<synchronous>, transform_indices = @transform_2, window_bounds = array<i64: 1, 64>}, {pipeline_mode = #tpu.pipeline_mode<synchronous>, transform_indices = @transform_3, window_bounds = array<i64: 64, 32>}, {pipeline_mode = #tpu.pipeline_mode<synchronous>, transform_indices = @transform_4, window_bounds = array<i64: 1, 32>}, {pipeline_mode = #tpu.pipeline_mode<synchronous>, transform_indices = @transform_5, window_bounds = array<i64: 32, 2>}, {pipeline_mode = #tpu.pipeline_mode<synchronous>, transform_indices = @transform_6, window_bounds = array<i64: 1, 2>}, {transform_indices = @transform_7, window_bounds = array<i64: 256, 2>}]} {
    %c0 = arith.constant 0 : index
    %c0_0 = arith.constant 0 : index
    %0 = vector.load %arg1[%c0, %c0_0] : memref<256x32xf32, #tpu.memory_space<vmem>>, vector<256x32xf32>
    %1 = arith.truncf %0 : vector<256x32xf32> to vector<256x32xbf16>
    %c0_1 = arith.constant 0 : index
    %c0_2 = arith.constant 0 : index
    %2 = vector.load %arg2[%c0_1, %c0_2] : memref<32x64xbf16, #tpu.memory_space<vmem>>, vector<32x64xbf16>
    %cst = arith.constant dense<0.000000e+00> : vector<256x64xf32>
    %3 = tpu.matmul %1, %2, %cst {dimension_numbers = #tpu.dot_dimension_numbers<[1], [0], [0], [1], [0, 0, 1, 1], [], []>} : vector<256x32xbf16>, vector<32x64xbf16>, vector<256x64xf32> -> vector<256x64xf32>
    %c0_3 = arith.constant 0 : index
    %c0_4 = arith.constant 0 : index
    %4 = vector.load %arg3[%c0_3, %c0_4] : memref<1x64xf32, #tpu.memory_space<vmem>>, vector<1x64xf32>
    %5 = vector.broadcast %4 : vector<1x64xf32> to vector<256x64xf32>
    %6 = arith.addf %3, %5 : vector<256x64xf32>
    %cst_5 = arith.constant 0.000000e+00 : f32
    %7 = vector.broadcast %cst_5 : f32 to vector<256x64xf32>
    %8 = arith.maximumf %6, %7 : vector<256x64xf32>
    %9 = arith.truncf %8 : vector<256x64xf32> to vector<256x64xbf16>
    %c0_6 = arith.constant 0 : index
    %c0_7 = arith.constant 0 : index
    %10 = vector.load %arg4[%c0_6, %c0_7] : memref<64x32xbf16, #tpu.memory_space<vmem>>, vector<64x32xbf16>
    %cst_8 = arith.constant dense<0.000000e+00> : vector<256x32xf32>
    %11 = tpu.matmul %9, %10, %cst_8 {dimension_numbers = #tpu.dot_dimension_numbers<[1], [0], [0], [1], [0, 0, 1, 1], [], []>} : vector<256x64xbf16>, vector<64x32xbf16>, vector<256x32xf32> -> vector<256x32xf32>
    %c0_9 = arith.constant 0 : index
    %c0_10 = arith.constant 0 : index
    %12 = vector.load %arg5[%c0_9, %c0_10] : memref<1x32xf32, #tpu.memory_space<vmem>>, vector<1x32xf32>
    %13 = vector.broadcast %12 : vector<1x32xf32> to vector<256x32xf32>
    %14 = arith.addf %11, %13 : vector<256x32xf32>
    %cst_11 = arith.constant 0.000000e+00 : f32
    %15 = vector.broadcast %cst_11 : f32 to vector<256x32xf32>
    %16 = arith.maximumf %14, %15 : vector<256x32xf32>
    %17 = arith.truncf %16 : vector<256x32xf32> to vector<256x32xbf16>
    %c0_12 = arith.constant 0 : index
    %c0_13 = arith.constant 0 : index
    %18 = vector.load %arg6[%c0_12, %c0_13] : memref<32x2xbf16, #tpu.memory_space<vmem>>, vector<32x2xbf16>
    %cst_14 = arith.constant dense<0.000000e+00> : vector<256x2xf32>
    %19 = tpu.matmul %17, %18, %cst_14 {dimension_numbers = #tpu.dot_dimension_numbers<[1], [0], [0], [1], [0, 0, 1, 1], [], []>} : vector<256x32xbf16>, vector<32x2xbf16>, vector<256x2xf32> -> vector<256x2xf32>
    %c0_15 = arith.constant 0 : index
    %c0_16 = arith.constant 0 : index
    %20 = vector.load %arg7[%c0_15, %c0_16] : memref<1x2xf32, #tpu.memory_space<vmem>>, vector<1x2xf32>
    %21 = vector.broadcast %20 : vector<1x2xf32> to vector<256x2xf32>
    %22 = arith.addf %19, %21 : vector<256x2xf32>
    %c0_17 = arith.constant 0 : index
    %c0_18 = arith.constant 0 : index
    %23 = vector.load %arg8[%c0_17, %c0_18] : memref<256x2xf32, #tpu.memory_space<vmem>>, vector<256x2xf32>
    tpu.vector_store %arg8[%c0_17, %c0_18], %22 {strides = array<i32>} : memref<256x2xf32, #tpu.memory_space<vmem>>, vector<256x2xf32>,
    return
  }
  func.func @transform_0(%arg0: i32) -> (i32, i32) {
    %c0_i32 = arith.constant 0 : i32
    %c0_i32_0 = arith.constant 0 : i32
    return %arg0, %c0_i32 : i32, i32
  }
  func.func @transform_1(%arg0: i32) -> (i32, i32) {
    %c0_i32 = arith.constant 0 : i32
    %c0_i32_0 = arith.constant 0 : i32
    %c0_i32_1 = arith.constant 0 : i32
    return %c0_i32, %c0_i32_0 : i32, i32
  }
  func.func @transform_2(%arg0: i32) -> (i32, i32) {
    %c0_i32 = arith.constant 0 : i32
    %c0_i32_0 = arith.constant 0 : i32
    %c0_i32_1 = arith.constant 0 : i32
    return %c0_i32, %c0_i32_0 : i32, i32
  }
  func.func @transform_3(%arg0: i32) -> (i32, i32) {
    %c0_i32 = arith.constant 0 : i32
    %c0_i32_0 = arith.constant 0 : i32
    %c0_i32_1 = arith.constant 0 : i32
    return %c0_i32, %c0_i32_0 : i32, i32
  }
  func.func @transform_4(%arg0: i32) -> (i32, i32) {
    %c0_i32 = arith.constant 0 : i32
    %c0_i32_0 = arith.constant 0 : i32
    %c0_i32_1 = arith.constant 0 : i32
    return %c0_i32, %c0_i32_0 : i32, i32
  }
  func.func @transform_5(%arg0: i32) -> (i32, i32) {
    %c0_i32 = arith.constant 0 : i32
    %c0_i32_0 = arith.constant 0 : i32
    %c0_i32_1 = arith.constant 0 : i32
    return %c0_i32, %c0_i32_0 : i32, i32
  }
  func.func @transform_6(%arg0: i32) -> (i32, i32) {
    %c0_i32 = arith.constant 0 : i32
    %c0_i32_0 = arith.constant 0 : i32
    %c0_i32_1 = arith.constant 0 : i32
    return %c0_i32, %c0_i32_0 : i32, i32
  }
  func.func @transform_7(%arg0: i32) -> (i32, i32) {
    %c0_i32 = arith.constant 0 : i32
    %c0_i32_0 = arith.constant 0 : i32
    return %arg0, %c0_i32 : i32, i32
  }
}

</mosaic_0001>

<llo_original>
// kernel: phishing_model_forward.1
$region0: #{phishing_model_forward.1}
  #allocation0 [shape = 'u32[]', space=smem, size = 0x4, offset = 0x4, fixed_abs, tag = 'smem constant byte address 0x4 - core index']
  #allocation1 [shape = 'u32[144,128]{1,0:T(1,128)}', space=vmem, size = 0x12000, scoped, tag = 'internal scratch']
  %s0 = inlined_call_operand.vmem [shape: f32[250,32], index: 0, kind: input, shape index: {}]
  %s1 = inlined_call_operand.vmem [shape: bf16[32,64], index: 1, kind: input, shape index: {}]
  %s2 = inlined_call_operand.vmem [shape: f32[1,64], index: 2, kind: input, shape index: {}]
  %s3 = inlined_call_operand.vmem [shape: bf16[64,32], index: 3, kind: input, shape index: {}]
  %s4 = inlined_call_operand.vmem [shape: f32[1,32], index: 4, kind: input, shape index: {}]
  %s5 = inlined_call_operand.vmem [shape: bf16[32,2], index: 5, kind: input, shape index: {}]
  %s6 = inlined_call_operand.vmem [shape: f32[1,2], index: 6, kind: input, shape index: {}]
  %s7 = inlined_call_operand.vmem [shape: f32[250,2], index: 7, kind: output, shape index: {}]
  %s8 = sld [smem:[#allocation0]]
  $region38: #{phishing_model_forward.1} parent=0
    _
  %s10 = ssub.s32 1, %s8
  %s11 = scalar_select 0, %s10, %s8
  // Predicated region
  $region2: #{phishing_model_forward.1} parent=0 // pred_check
    _
  $region3: #{phishing_model_forward.1} parent=0 // pred_check_branch
    %13 = sbr.rel (0) target = $region5
  $region4: #{phishing_model_forward.1} parent=0 // pred_region
    _
  $region5: #{phishing_model_forward.1} parent=0 // pred_fallthru
    _
  // Predicated region
  $region6: #{phishing_model_forward.1} parent=0 // pred_check
    _
  $region7: #{phishing_model_forward.1} parent=0 // pred_check_branch
    %15 = sbr.rel (0) target = $region9
  $region8: #{phishing_model_forward.1} parent=0 // pred_region
    _
  $region9: #{phishing_model_forward.1} parent=0 // pred_fallthru
    _
  // Predicated region
  $region10: #{phishing_model_forward.1} parent=0 // pred_check
    _
  $region11: #{phishing_model_forward.1} parent=0 // pred_check_branch
    %17 = sbr.rel (0) target = $region13
  $region12: #{phishing_model_forward.1} parent=0 // pred_region
    _
  $region13: #{phishing_model_forward.1} parent=0 // pred_fallthru
    _
  // Predicated region
  $region14: #{phishing_model_forward.1} parent=0 // pred_check
    _
  $region15: #{phishing_model_forward.1} parent=0 // pred_check_branch
    %19 = sbr.rel (0) target = $region17
  $region16: #{phishing_model_forward.1} parent=0 // pred_region
    _
  $region17: #{phishing_model_forward.1} parent=0 // pred_fallthru
    _
  // Predicated region
  $region18: #{phishing_model_forward.1} parent=0 // pred_check
    _
  $region19: #{phishing_model_forward.1} parent=0 // pred_check_branch
    %21 = sbr.rel (0) target = $region21
  $region20: #{phishing_model_forward.1} parent=0 // pred_region
    _
  $region21: #{phishing_model_forward.1} parent=0 // pred_fallthru
    _
  // Predicated region
  $region22: #{phishing_model_forward.1} parent=0 // pred_check
    _
  $region23: #{phishing_model_forward.1} parent=0 // pred_check_branch
    %23 = sbr.rel (0) target = $region25
  $region24: #{phishing_model_forward.1} parent=0 // pred_region
    _
  $region25: #{phishing_model_forward.1} parent=0 // pred_fallthru
    _
  // Predicated region
  $region26: #{phishing_model_forward.1} parent=0 // pred_check
    _
  $region27: #{phishing_model_forward.1} parent=0 // pred_check_branch
    %25 = sbr.rel (0) target = $region29
  $region28: #{phishing_model_forward.1} parent=0 // pred_region
    _
  $region29: #{phishing_model_forward.1} parent=0 // pred_fallthru
    _
  %v27 = vld [vmem:[%s0] sm:$0xff]
  %v28 = vld [vmem:[%s0 + $0x8] sm:$0xff]
  %v29 = vld [vmem:[%s0 + $0x10] sm:$0xff]
  %v30 = vld [vmem:[%s0 + $0x18] sm:$0xff]
  %v31 = vld [vmem:[%s0 + $0x20] sm:$0xff]
  %v32 = vld [vmem:[%s0 + $0x28] sm:$0xff]
  %v33 = vld [vmem:[%s0 + $0x30] sm:$0xff]
  %v34 = vld [vmem:[%s0 + $0x38] sm:$0xff]
  %v35 = vld [vmem:[%s0 + $0x40] sm:$0xff]
  %v36 = vld [vmem:[%s0 + $0x48] sm:$0xff]
  %v37 = vld [vmem:[%s0 + $0x50] sm:$0xff]
  %v38 = vld [vmem:[%s0 + $0x58] sm:$0xff]
  %v39 = vld [vmem:[%s0 + $0x60] sm:$0xff]
  %v40 = vld [vmem:[%s0 + $0x68] sm:$0xff]
  %v41 = vld [vmem:[%s0 + $0x70] sm:$0xff]
  %v42 = vld [vmem:[%s0 + $0x78] sm:$0xff]
  %v43 = vld [vmem:[%s0 + $0x80] sm:$0xff]
  %v44 = vld [vmem:[%s0 + $0x88] sm:$0xff]
  %v45 = vld [vmem:[%s0 + $0x90] sm:$0xff]
  %v46 = vld [vmem:[%s0 + $0x98] sm:$0xff]
  %v47 = vld [vmem:[%s0 + $0xa0] sm:$0xff]
  %v48 = vld [vmem:[%s0 + $0xa8] sm:$0xff]
  %v49 = vld [vmem:[%s0 + $0xb0] sm:$0xff]
  %v50 = vld [vmem:[%s0 + $0xb8] sm:$0xff]
  %v51 = vld [vmem:[%s0 + $0xc0] sm:$0xff]
  %v52 = vld [vmem:[%s0 + $0xc8] sm:$0xff]
  %v53 = vld [vmem:[%s0 + $0xd0] sm:$0xff]
  %v54 = vld [vmem:[%s0 + $0xd8] sm:$0xff]
  %v55 = vld [vmem:[%s0 + $0xe0] sm:$0xff]
  %v56 = vld [vmem:[%s0 + $0xe8] sm:$0xff]
  %v57 = vld [vmem:[%s0 + $0xf0] sm:$0xff]
  %v58 = vld [vmem:[%s0 + $0xf8] sm:$0xff]
  %v59 = vpack.c.bf16 %v28, %v27
  %v60 = vpack.c.bf16 %v30, %v29
  %v61 = vpack.c.bf16 %v32, %v31
  %v62 = vpack.c.bf16 %v34, %v33
  %v63 = vpack.c.bf16 %v36, %v35
  %v64 = vpack.c.bf16 %v38, %v37
  %v65 = vpack.c.bf16 %v40, %v39
  %v66 = vpack.c.bf16 %v42, %v41
  %v67 = vpack.c.bf16 %v44, %v43
  %v68 = vpack.c.bf16 %v46, %v45
  %v69 = vpack.c.bf16 %v48, %v47
  %v70 = vpack.c.bf16 %v50, %v49
  %v71 = vpack.c.bf16 %v52, %v51
  %v72 = vpack.c.bf16 %v54, %v53
  %v73 = vpack.c.bf16 %v56, %v55
  %v74 = vpack.c.bf16 %v58, %v57
  %v75 = vld [vmem:[%s1] sm:$0xf]
  %v76 = vld [vmem:[%s1 + $0x4] sm:$0xf]
  %v77 = vld [vmem:[%s1 + $0x8] sm:$0xf]
  %v78 = vld [vmem:[%s1 + $0xc] sm:$0xf]
  %v79 = vld [vmem:[%s2] sm:$0x1]
  %v81 = vlaneseq
  %v82 = vshrl.u32 %v81, 7
  %v83 = vsub.s32 0, %v82
  %v84 = vrot.slane %v79, %v83
  %v90 = vunpack.c.l.b16 %v75
  %v91 = vunpack.c.l.b16 %v76
  %v92 = vunpack.c.l.b16 %v77
  %v93 = vunpack.c.l.b16 %v78
  %v94 = vpack.c.b16 %v91, %v90
  %v95 = vpack.c.b16 %v93, %v92
  %vm98 = vcmask 261120
  %v100 = vsel %vm98, %v59, 0
  %v103 = vsel %vm98, %v60, 0
  %v106 = vsel %vm98, %v61, 0
  %v109 = vsel %vm98, %v62, 0
  %v112 = vsel %vm98, %v63, 0
  %v115 = vsel %vm98, %v64, 0
  %v118 = vsel %vm98, %v65, 0
  %v121 = vsel %vm98, %v66, 0
  %v124 = vsel %vm98, %v67, 0
  %v127 = vsel %vm98, %v68, 0
  %v130 = vsel %vm98, %v69, 0
  %v133 = vsel %vm98, %v70, 0
  %v136 = vsel %vm98, %v71, 0
  %v139 = vsel %vm98, %v72, 0
  %v142 = vsel %vm98, %v73, 0
  %v145 = vsel %vm98, %v74, 0
  %147 = vmatprep.subr.bf16.mxu0 0
  %148 = vmatpush1.bf16.msra.mxu0 0
  %149 = vmatprep.subr.bf16.mxu0 0
  %150 = vmatpush1.bf16.msra.mxu0 0
  %151 = vmatprep.subr.bf16.mxu0 0
  %152 = vmatpush1.bf16.msra.mxu0 0
  %153 = vmatprep.subr.bf16.mxu0 0
  %154 = vmatpush1.bf16.msra.mxu0 0
  %155 = vmatprep.subr.bf16.mxu0 0
  %156 = vmatpush1.bf16.msra.mxu0 0
  %157 = vmatprep.subr.bf16.mxu0 0
  %158 = vmatpush1.bf16.msra.mxu0 0
  %159 = vmatprep.subr.bf16.mxu0 0
  %160 = vmatpush1.bf16.msra.mxu0 %v95
  %161 = vmatprep.subr.bf16.mxu0 0
  %162 = vmatpush1.bf16.msra.mxu0 %v94
  %163 = vmatprep.subr.bf16.mxu0 0
  %164 = vmatpush2.bf16.msra.mxu0 0
  %165 = vmatprep.subr.bf16.mxu0 0
  %166 = vmatpush2.bf16.msra.mxu0 0
  %167 = vmatprep.subr.bf16.mxu0 0
  %168 = vmatpush2.bf16.msra.mxu0 0
  %169 = vmatprep.subr.bf16.mxu0 0
  %170 = vmatpush2.bf16.msra.mxu0 0
  %171 = vmatprep.subr.bf16.mxu0 0
  %172 = vmatpush2.bf16.msra.mxu0 0
  %173 = vmatprep.subr.bf16.mxu0 0
  %174 = vmatpush2.bf16.msra.mxu0 0
  %175 = vmatprep.subr.bf16.mxu0 0
  %176 = vmatpush2.bf16.msra.mxu0 0
  %177 = vmatprep.subr.bf16.mxu0 0
  %178 = vmatpush2.bf16.msra.mxu0 0
  %179 = vmatprep.mubr.bf16.mxu0 0
  %180 = vmatmul.mubr.bf16.gmra.mxu0 %v100
  %v181 = vpop.f32.mrf.mxu0
  %v182 = vadd.f32 %v84, %v181
  %v183 = vpop.f32.mrf.mxu0
  %v184 = vpop.f32.mrf.mxu0
  %v185 = vadd.f32 %v84, %v184
  %v186 = vpop.f32.mrf.mxu0
  %187 = vmatprep.mubr.bf16.mxu0 0
  %188 = vmatmul.mubr.bf16.gmra.mxu0 %v103
  %v189 = vpop.f32.mrf.mxu0
  %v190 = vadd.f32 %v84, %v189
  %v191 = vpop.f32.mrf.mxu0
  %v192 = vpop.f32.mrf.mxu0
  %v193 = vadd.f32 %v84, %v192
  %v194 = vpop.f32.mrf.mxu0
  %195 = vmatprep.mubr.bf16.mxu0 0
  %196 = vmatmul.mubr.bf16.gmra.mxu0 %v106
  %v197 = vpop.f32.mrf.mxu0
  %v198 = vadd.f32 %v84, %v197
  %v199 = vpop.f32.mrf.mxu0
  %v200 = vpop.f32.mrf.mxu0
  %v201 = vadd.f32 %v84, %v200
  %v202 = vpop.f32.mrf.mxu0
  %203 = vmatprep.mubr.bf16.mxu0 0
  %204 = vmatmul.mubr.bf16.gmra.mxu0 %v109
  %v205 = vpop.f32.mrf.mxu0
  %v206 = vadd.f32 %v84, %v205
  %v207 = vpop.f32.mrf.mxu0
  %v208 = vpop.f32.mrf.mxu0
  %v209 = vadd.f32 %v84, %v208
  %v210 = vpop.f32.mrf.mxu0
  %211 = vmatprep.mubr.bf16.mxu0 0
  %212 = vmatmul.mubr.bf16.gmra.mxu0 %v112
  %v213 = vpop.f32.mrf.mxu0
  %v214 = vadd.f32 %v84, %v213
  %v215 = vpop.f32.mrf.mxu0
  %v216 = vpop.f32.mrf.mxu0
  %v217 = vadd.f32 %v84, %v216
  %v218 = vpop.f32.mrf.mxu0
  %219 = vmatprep.mubr.bf16.mxu0 0
  %220 = vmatmul.mubr.bf16.gmra.mxu0 %v115
  %v221 = vpop.f32.mrf.mxu0
  %v222 = vadd.f32 %v84, %v221
  %v223 = vpop.f32.mrf.mxu0
  %v224 = vpop.f32.mrf.mxu0
  %v225 = vadd.f32 %v84, %v224
  %v226 = vpop.f32.mrf.mxu0
  %227 = vmatprep.mubr.bf16.mxu0 0
  %228 = vmatmul.mubr.bf16.gmra.mxu0 %v118
  %v229 = vpop.f32.mrf.mxu0
  %v230 = vadd.f32 %v84, %v229
  %v231 = vpop.f32.mrf.mxu0
  %v232 = vpop.f32.mrf.mxu0
  %v233 = vadd.f32 %v84, %v232
  %v234 = vpop.f32.mrf.mxu0
  %235 = vmatprep.mubr.bf16.mxu0 0
  %236 = vmatmul.mubr.bf16.gmra.mxu0 %v121
  %v237 = vpop.f32.mrf.mxu0
  %v238 = vadd.f32 %v84, %v237
  %v239 = vpop.f32.mrf.mxu0
  %v240 = vpop.f32.mrf.mxu0
  %v241 = vadd.f32 %v84, %v240
  %v242 = vpop.f32.mrf.mxu0
  %243 = vmatprep.mubr.bf16.mxu0 0
  %244 = vmatmul.mubr.bf16.gmra.mxu0 %v124
  %v245 = vpop.f32.mrf.mxu0
  %v246 = vadd.f32 %v84, %v245
  %v247 = vpop.f32.mrf.mxu0
  %v248 = vpop.f32.mrf.mxu0
  %v249 = vadd.f32 %v84, %v248
  %v250 = vpop.f32.mrf.mxu0
  %251 = vmatprep.mubr.bf16.mxu0 0
  %252 = vmatmul.mubr.bf16.gmra.mxu0 %v127
  %v253 = vpop.f32.mrf.mxu0
  %v254 = vadd.f32 %v84, %v253
  %v255 = vpop.f32.mrf.mxu0
  %v256 = vpop.f32.mrf.mxu0
  %v257 = vadd.f32 %v84, %v256
  %v258 = vpop.f32.mrf.mxu0
  %259 = vmatprep.mubr.bf16.mxu0 0
  %260 = vmatmul.mubr.bf16.gmra.mxu0 %v130
  %v261 = vpop.f32.mrf.mxu0
  %v262 = vadd.f32 %v84, %v261
  %v263 = vpop.f32.mrf.mxu0
  %v264 = vpop.f32.mrf.mxu0
  %v265 = vadd.f32 %v84, %v264
  %v266 = vpop.f32.mrf.mxu0
  %267 = vmatprep.mubr.bf16.mxu0 0
  %268 = vmatmul.mubr.bf16.gmra.mxu0 %v133
  %v269 = vpop.f32.mrf.mxu0
  %v270 = vadd.f32 %v84, %v269
  %v271 = vpop.f32.mrf.mxu0
  %v272 = vpop.f32.mrf.mxu0
  %v273 = vadd.f32 %v84, %v272
  %v274 = vpop.f32.mrf.mxu0
  %275 = vmatprep.mubr.bf16.mxu0 0
  %276 = vmatmul.mubr.bf16.gmra.mxu0 %v136
  %v277 = vpop.f32.mrf.mxu0
  %v278 = vadd.f32 %v84, %v277
  %v279 = vpop.f32.mrf.mxu0
  %v280 = vpop.f32.mrf.mxu0
  %v281 = vadd.f32 %v84, %v280
  %v282 = vpop.f32.mrf.mxu0
  %283 = vmatprep.mubr.bf16.mxu0 0
  %284 = vmatmul.mubr.bf16.gmra.mxu0 %v139
  %v285 = vpop.f32.mrf.mxu0
  %v286 = vadd.f32 %v84, %v285
  %v287 = vpop.f32.mrf.mxu0
  %v288 = vpop.f32.mrf.mxu0
  %v289 = vadd.f32 %v84, %v288
  %v290 = vpop.f32.mrf.mxu0
  %291 = vmatprep.mubr.bf16.mxu0 0
  %292 = vmatmul.mubr.bf16.gmra.mxu0 %v142
  %v293 = vpop.f32.mrf.mxu0
  %v294 = vadd.f32 %v84, %v293
  %v295 = vpop.f32.mrf.mxu0
  %v296 = vpop.f32.mrf.mxu0
  %v297 = vadd.f32 %v84, %v296
  %v298 = vpop.f32.mrf.mxu0
  %299 = vmatprep.mubr.bf16.mxu0 0
  %300 = vmatmul.mubr.bf16.gmra.mxu0 %v145
  %v301 = vpop.f32.mrf.mxu0
  %v302 = vadd.f32 %v84, %v301
  %v303 = vpop.f32.mrf.mxu0
  %v304 = vpop.f32.mrf.mxu0
  %v305 = vadd.f32 %v84, %v304
  %v306 = vpop.f32.mrf.mxu0
  %307 = vdwg.mxu0
  %v308 = vmax.f32 %v182, 0.0
  %v309 = vmax.f32 %v185, 0.0
  %v310 = vmax.f32 %v190, 0.0
  %v311 = vmax.f32 %v193, 0.0
  %v312 = vmax.f32 %v198, 0.0
  %v313 = vmax.f32 %v201, 0.0
  %v314 = vmax.f32 %v206, 0.0
  %v315 = vmax.f32 %v209, 0.0
  %v316 = vmax.f32 %v214, 0.0
  %v317 = vmax.f32 %v217, 0.0
  %v318 = vmax.f32 %v222, 0.0
  %v319 = vmax.f32 %v225, 0.0
  %v320 = vmax.f32 %v230, 0.0
  %v321 = vmax.f32 %v233, 0.0
  %v322 = vmax.f32 %v238, 0.0
  %v323 = vmax.f32 %v241, 0.0
  %v324 = vmax.f32 %v246, 0.0
  %v325 = vmax.f32 %v249, 0.0
  %v326 = vmax.f32 %v254, 0.0
  %v327 = vmax.f32 %v257, 0.0
  %v328 = vmax.f32 %v262, 0.0
  %v329 = vmax.f32 %v265, 0.0
  %v330 = vmax.f32 %v270, 0.0
  %v331 = vmax.f32 %v273, 0.0
  %v332 = vmax.f32 %v278, 0.0
  %v333 = vmax.f32 %v281, 0.0
  %v334 = vmax.f32 %v286, 0.0
  %v335 = vmax.f32 %v289, 0.0
  %v336 = vmax.f32 %v294, 0.0
  %v337 = vmax.f32 %v297, 0.0
  %v338 = vmax.f32 %v302, 0.0
  %v339 = vmax.f32 %v305, 0.0
  %v340 = vpack.c.bf16 %v309, %v308
  %v341 = vpack.c.bf16 %v311, %v310
  %v342 = vpack.c.bf16 %v313, %v312
  %v343 = vpack.c.bf16 %v315, %v314
  %v344 = vpack.c.bf16 %v317, %v316
  %v345 = vpack.c.bf16 %v319, %v318
  %v346 = vpack.c.bf16 %v321, %v320
  %v347 = vpack.c.bf16 %v323, %v322
  %v348 = vpack.c.bf16 %v325, %v324
  %v349 = vpack.c.bf16 %v327, %v326
  %v350 = vpack.c.bf16 %v329, %v328
  %v351 = vpack.c.bf16 %v331, %v330
  %v352 = vpack.c.bf16 %v333, %v332
  %v353 = vpack.c.bf16 %v335, %v334
  %v354 = vpack.c.bf16 %v337, %v336
  %v355 = vpack.c.bf16 %v339, %v338
  %v356 = vld [vmem:[%s3] sm:$0xf]
  %v357 = vld [vmem:[%s3 + $0x4] sm:$0xf]
  %v358 = vld [vmem:[%s3 + $0x8] sm:$0xf]
  %v359 = vld [vmem:[%s3 + $0xc] sm:$0xf]
  %v360 = vld [vmem:[%s3 + $0x10] sm:$0xf]
  %v361 = vld [vmem:[%s3 + $0x14] sm:$0xf]
  %v362 = vld [vmem:[%s3 + $0x18] sm:$0xf]
  %v363 = vld [vmem:[%s3 + $0x1c] sm:$0xf]
  %v364 = vld [vmem:[%s4] sm:$0x1]
  %v366 = vlaneseq
  %v367 = vshrl.u32 %v366, 7
  %v368 = vsub.s32 0, %v367
  %v369 = vrot.slane %v364, %v368
  %v379 = vunpack.c.l.b16 %v356
  %v380 = vunpack.c.l.b16 %v357
  %v381 = vunpack.c.l.b16 %v358
  %v382 = vunpack.c.l.b16 %v359
  %v383 = vunpack.c.l.b16 %v360
  %v384 = vunpack.c.l.b16 %v361
  %v385 = vunpack.c.l.b16 %v362
  %v386 = vunpack.c.l.b16 %v363
  %v387 = vpack.c.b16 %v380, %v379
  %v388 = vpack.c.b16 %v382, %v381
  %v389 = vpack.c.b16 %v384, %v383
  %v390 = vpack.c.b16 %v386, %v385
  %vm395 = vcmask 523264
  %v397 = vsel %vm395, %v340, 0
  %v400 = vsel %vm395, %v341, 0
  %v403 = vsel %vm395, %v342, 0
  %v406 = vsel %vm395, %v343, 0
  %v409 = vsel %vm395, %v344, 0
  %v412 = vsel %vm395, %v345, 0
  %v415 = vsel %vm395, %v346, 0
  %v418 = vsel %vm395, %v347, 0
  %v421 = vsel %vm395, %v348, 0
  %v424 = vsel %vm395, %v349, 0
  %v427 = vsel %vm395, %v350, 0
  %v430 = vsel %vm395, %v351, 0
  %v433 = vsel %vm395, %v352, 0
  %v436 = vsel %vm395, %v353, 0
  %v439 = vsel %vm395, %v354, 0
  %v442 = vsel %vm395, %v355, 0
  %444 = vmatprep.subr.bf16.mxu0 0
  %445 = vmatpush1.bf16.msra.mxu0 0
  %446 = vmatprep.subr.bf16.mxu0 0
  %447 = vmatpush1.bf16.msra.mxu0 0
  %448 = vmatprep.subr.bf16.mxu0 0
  %449 = vmatpush1.bf16.msra.mxu0 0
  %450 = vmatprep.subr.bf16.mxu0 0
  %451 = vmatpush1.bf16.msra.mxu0 0
  %452 = vmatprep.subr.bf16.mxu0 0
  %453 = vmatpush1.bf16.msra.mxu0 %v390
  %454 = vmatprep.subr.bf16.mxu0 0
  %455 = vmatpush1.bf16.msra.mxu0 %v389
  %456 = vmatprep.subr.bf16.mxu0 0
  %457 = vmatpush1.bf16.msra.mxu0 %v388
  %458 = vmatprep.subr.bf16.mxu0 0
  %459 = vmatpush1.bf16.msra.mxu0 %v387
  %460 = vmatprep.subr.bf16.mxu0 0
  %461 = vmatpush2.bf16.msra.mxu0 0
  %462 = vmatprep.subr.bf16.mxu0 0
  %463 = vmatpush2.bf16.msra.mxu0 0
  %464 = vmatprep.subr.bf16.mxu0 0
  %465 = vmatpush2.bf16.msra.mxu0 0
  %466 = vmatprep.subr.bf16.mxu0 0
  %467 = vmatpush2.bf16.msra.mxu0 0
  %468 = vmatprep.subr.bf16.mxu0 0
  %469 = vmatpush2.bf16.msra.mxu0 0
  %470 = vmatprep.subr.bf16.mxu0 0
  %471 = vmatpush2.bf16.msra.mxu0 0
  %472 = vmatprep.subr.bf16.mxu0 0
  %473 = vmatpush2.bf16.msra.mxu0 0
  %474 = vmatprep.subr.bf16.mxu0 0
  %475 = vmatpush2.bf16.msra.mxu0 0
  %476 = vmatprep.mubr.bf16.mxu0 0
  %477 = vmatmul.mubr.bf16.gmra.mxu0 %v397
  %v478 = vpop.f32.mrf.mxu0
  %v479 = vadd.f32 %v369, %v478
  %v480 = vpop.f32.mrf.mxu0
  %v481 = vpop.f32.mrf.mxu0
  %v482 = vadd.f32 %v369, %v481
  %v483 = vpop.f32.mrf.mxu0
  %484 = vmatprep.mubr.bf16.mxu0 0
  %485 = vmatmul.mubr.bf16.gmra.mxu0 %v400
  %v486 = vpop.f32.mrf.mxu0
  %v487 = vadd.f32 %v369, %v486
  %v488 = vpop.f32.mrf.mxu0
  %v489 = vpop.f32.mrf.mxu0
  %v490 = vadd.f32 %v369, %v489
  %v491 = vpop.f32.mrf.mxu0
  %492 = vmatprep.mubr.bf16.mxu0 0
  %493 = vmatmul.mubr.bf16.gmra.mxu0 %v403
  %v494 = vpop.f32.mrf.mxu0
  %v495 = vadd.f32 %v369, %v494
  %v496 = vpop.f32.mrf.mxu0
  %v497 = vpop.f32.mrf.mxu0
  %v498 = vadd.f32 %v369, %v497
  %v499 = vpop.f32.mrf.mxu0
  %500 = vmatprep.mubr.bf16.mxu0 0
  %501 = vmatmul.mubr.bf16.gmra.mxu0 %v406
  %v502 = vpop.f32.mrf.mxu0
  %v503 = vadd.f32 %v369, %v502
  %v504 = vpop.f32.mrf.mxu0
  %v505 = vpop.f32.mrf.mxu0
  %v506 = vadd.f32 %v369, %v505
  %v507 = vpop.f32.mrf.mxu0
  %508 = vmatprep.mubr.bf16.mxu0 0
  %509 = vmatmul.mubr.bf16.gmra.mxu0 %v409
  %v510 = vpop.f32.mrf.mxu0
  %v511 = vadd.f32 %v369, %v510
  %v512 = vpop.f32.mrf.mxu0
  %v513 = vpop.f32.mrf.mxu0
  %v514 = vadd.f32 %v369, %v513
  %v515 = vpop.f32.mrf.mxu0
  %516 = vmatprep.mubr.bf16.mxu0 0
  %517 = vmatmul.mubr.bf16.gmra.mxu0 %v412
  %v518 = vpop.f32.mrf.mxu0
  %v519 = vadd.f32 %v369, %v518
  %v520 = vpop.f32.mrf.mxu0
  %v521 = vpop.f32.mrf.mxu0
  %v522 = vadd.f32 %v369, %v521
  %v523 = vpop.f32.mrf.mxu0
  %524 = vmatprep.mubr.bf16.mxu0 0
  %525 = vmatmul.mubr.bf16.gmra.mxu0 %v415
  %v526 = vpop.f32.mrf.mxu0
  %v527 = vadd.f32 %v369, %v526
  %v528 = vpop.f32.mrf.mxu0
  %v529 = vpop.f32.mrf.mxu0
  %v530 = vadd.f32 %v369, %v529
  %v531 = vpop.f32.mrf.mxu0
  %532 = vmatprep.mubr.bf16.mxu0 0
  %533 = vmatmul.mubr.bf16.gmra.mxu0 %v418
  %v534 = vpop.f32.mrf.mxu0
  %v535 = vadd.f32 %v369, %v534
  %v536 = vpop.f32.mrf.mxu0
  %v537 = vpop.f32.mrf.mxu0
  %v538 = vadd.f32 %v369, %v537
  %v539 = vpop.f32.mrf.mxu0
  %540 = vmatprep.mubr.bf16.mxu0 0
  %541 = vmatmul.mubr.bf16.gmra.mxu0 %v421
  %v542 = vpop.f32.mrf.mxu0
  %v543 = vadd.f32 %v369, %v542
  %v544 = vpop.f32.mrf.mxu0
  %v545 = vpop.f32.mrf.mxu0
  %v546 = vadd.f32 %v369, %v545
  %v547 = vpop.f32.mrf.mxu0
  %548 = vmatprep.mubr.bf16.mxu0 0
  %549 = vmatmul.mubr.bf16.gmra.mxu0 %v424
  %v550 = vpop.f32.mrf.mxu0
  %v551 = vadd.f32 %v369, %v550
  %v552 = vpop.f32.mrf.mxu0
  %v553 = vpop.f32.mrf.mxu0
  %v554 = vadd.f32 %v369, %v553
  %v555 = vpop.f32.mrf.mxu0
  %556 = vmatprep.mubr.bf16.mxu0 0
  %557 = vmatmul.mubr.bf16.gmra.mxu0 %v427
  %v558 = vpop.f32.mrf.mxu0
  %v559 = vadd.f32 %v369, %v558
  %v560 = vpop.f32.mrf.mxu0
  %v561 = vpop.f32.mrf.mxu0
  %v562 = vadd.f32 %v369, %v561
  %v563 = vpop.f32.mrf.mxu0
  %564 = vmatprep.mubr.bf16.mxu0 0
  %565 = vmatmul.mubr.bf16.gmra.mxu0 %v430
  %v566 = vpop.f32.mrf.mxu0
  %v567 = vadd.f32 %v369, %v566
  %v568 = vpop.f32.mrf.mxu0
  %v569 = vpop.f32.mrf.mxu0
  %v570 = vadd.f32 %v369, %v569
  %v571 = vpop.f32.mrf.mxu0
  %572 = vmatprep.mubr.bf16.mxu0 0
  %573 = vmatmul.mubr.bf16.gmra.mxu0 %v433
  %v574 = vpop.f32.mrf.mxu0
  %v575 = vadd.f32 %v369, %v574
  %v576 = vpop.f32.mrf.mxu0
  %v577 = vpop.f32.mrf.mxu0
  %v578 = vadd.f32 %v369, %v577
  %v579 = vpop.f32.mrf.mxu0
  %580 = vmatprep.mubr.bf16.mxu0 0
  %581 = vmatmul.mubr.bf16.gmra.mxu0 %v436
  %v582 = vpop.f32.mrf.mxu0
  %v583 = vadd.f32 %v369, %v582
  %v584 = vpop.f32.mrf.mxu0
  %v585 = vpop.f32.mrf.mxu0
  %v586 = vadd.f32 %v369, %v585
  %v587 = vpop.f32.mrf.mxu0
  %588 = vmatprep.mubr.bf16.mxu0 0
  %589 = vmatmul.mubr.bf16.gmra.mxu0 %v439
  %v590 = vpop.f32.mrf.mxu0
  %v591 = vadd.f32 %v369, %v590
  %v592 = vpop.f32.mrf.mxu0
  %v593 = vpop.f32.mrf.mxu0
  %v594 = vadd.f32 %v369, %v593
  %v595 = vpop.f32.mrf.mxu0
  %596 = vmatprep.mubr.bf16.mxu0 0
  %597 = vmatmul.mubr.bf16.gmra.mxu0 %v442
  %v598 = vpop.f32.mrf.mxu0
  %v599 = vadd.f32 %v369, %v598
  %v600 = vpop.f32.mrf.mxu0
  %v601 = vpop.f32.mrf.mxu0
  %v602 = vadd.f32 %v369, %v601
  %v603 = vpop.f32.mrf.mxu0
  %604 = vdwg.mxu0
  %v605 = vmax.f32 %v479, 0.0
  %v606 = vmax.f32 %v482, 0.0
  %v607 = vmax.f32 %v487, 0.0
  %v608 = vmax.f32 %v490, 0.0
  %v609 = vmax.f32 %v495, 0.0
  %v610 = vmax.f32 %v498, 0.0
  %v611 = vmax.f32 %v503, 0.0
  %v612 = vmax.f32 %v506, 0.0
  %v613 = vmax.f32 %v511, 0.0
  %v614 = vmax.f32 %v514, 0.0
  %v615 = vmax.f32 %v519, 0.0
  %v616 = vmax.f32 %v522, 0.0
  %v617 = vmax.f32 %v527, 0.0
  %v618 = vmax.f32 %v530, 0.0
  %v619 = vmax.f32 %v535, 0.0
  %v620 = vmax.f32 %v538, 0.0
  %v621 = vmax.f32 %v543, 0.0
  %v622 = vmax.f32 %v546, 0.0
  %v623 = vmax.f32 %v551, 0.0
  %v624 = vmax.f32 %v554, 0.0
  %v625 = vmax.f32 %v559, 0.0
  %v626 = vmax.f32 %v562, 0.0
  %v627 = vmax.f32 %v567, 0.0
  %v628 = vmax.f32 %v570, 0.0
  %v629 = vmax.f32 %v575, 0.0
  %v630 = vmax.f32 %v578, 0.0
  %v631 = vmax.f32 %v583, 0.0
  %v632 = vmax.f32 %v586, 0.0
  %v633 = vmax.f32 %v591, 0.0
  %v634 = vmax.f32 %v594, 0.0
  %v635 = vmax.f32 %v599, 0.0
  %v636 = vmax.f32 %v602, 0.0
  %v637 = vpack.c.bf16 %v606, %v605
  %v638 = vpack.c.bf16 %v608, %v607
  %v639 = vpack.c.bf16 %v610, %v609
  %v640 = vpack.c.bf16 %v612, %v611
  %v641 = vpack.c.bf16 %v614, %v613
  %v642 = vpack.c.bf16 %v616, %v615
  %v643 = vpack.c.bf16 %v618, %v617
  %v644 = vpack.c.bf16 %v620, %v619
  %v645 = vpack.c.bf16 %v622, %v621
  %v646 = vpack.c.bf16 %v624, %v623
  %v647 = vpack.c.bf16 %v626, %v625
  %v648 = vpack.c.bf16 %v628, %v627
  %v649 = vpack.c.bf16 %v630, %v629
  %v650 = vpack.c.bf16 %v632, %v631
  %v651 = vpack.c.bf16 %v634, %v633
  %v652 = vpack.c.bf16 %v636, %v635
  %v653 = vld [vmem:[%s5] sm:$0xf]
  %v654 = vld [vmem:[%s5 + $0x4] sm:$0xf]
  %v655 = vld [vmem:[%s5 + $0x8] sm:$0xf]
  %v656 = vld [vmem:[%s5 + $0xc] sm:$0xf]
  %v657 = vld [vmem:[%s6] sm:$0x1]
  %v659 = vlaneseq
  %v660 = vshrl.u32 %v659, 7
  %v661 = vsub.s32 0, %v660
  %v662 = vrot.slane %v657, %v661
  %v668 = vunpack.c.l.b16 %v653
  %v669 = vunpack.c.l.b16 %v654
  %v670 = vunpack.c.l.b16 %v655
  %v671 = vunpack.c.l.b16 %v656
  %v672 = vpack.c.b16 %v669, %v668
  %v673 = vpack.c.b16 %v671, %v670
  %v677 = vsel %vm98, %v637, 0
  %v680 = vsel %vm98, %v638, 0
  %v683 = vsel %vm98, %v639, 0
  %v686 = vsel %vm98, %v640, 0
  %v689 = vsel %vm98, %v641, 0
  %v692 = vsel %vm98, %v642, 0
  %v695 = vsel %vm98, %v643, 0
  %v698 = vsel %vm98, %v644, 0
  %v701 = vsel %vm98, %v645, 0
  %v704 = vsel %vm98, %v646, 0
  %v707 = vsel %vm98, %v647, 0
  %v710 = vsel %vm98, %v648, 0
  %v713 = vsel %vm98, %v649, 0
  %v716 = vsel %vm98, %v650, 0
  %v719 = vsel %vm98, %v651, 0
  %v722 = vsel %vm98, %v652, 0
  %724 = vmatprep.subr.bf16.mxu0 0
  %725 = vmatpush1.bf16.msra.mxu0 0
  %726 = vmatprep.subr.bf16.mxu0 0
  %727 = vmatpush1.bf16.msra.mxu0 0
  %728 = vmatprep.subr.bf16.mxu0 0
  %729 = vmatpush1.bf16.msra.mxu0 0
  %730 = vmatprep.subr.bf16.mxu0 0
  %731 = vmatpush1.bf16.msra.mxu0 0
  %732 = vmatprep.subr.bf16.mxu0 0
  %733 = vmatpush1.bf16.msra.mxu0 0
  %734 = vmatprep.subr.bf16.mxu0 0
  %735 = vmatpush1.bf16.msra.mxu0 0
  %736 = vmatprep.subr.bf16.mxu0 0
  %737 = vmatpush1.bf16.msra.mxu0 %v673
  %738 = vmatprep.subr.bf16.mxu0 0
  %739 = vmatpush1.bf16.msra.mxu0 %v672
  %740 = vmatprep.subr.bf16.mxu0 0
  %741 = vmatpush2.bf16.msra.mxu0 0
  %742 = vmatprep.subr.bf16.mxu0 0
  %743 = vmatpush2.bf16.msra.mxu0 0
  %744 = vmatprep.subr.bf16.mxu0 0
  %745 = vmatpush2.bf16.msra.mxu0 0
  %746 = vmatprep.subr.bf16.mxu0 0
  %747 = vmatpush2.bf16.msra.mxu0 0
  %748 = vmatprep.subr.bf16.mxu0 0
  %749 = vmatpush2.bf16.msra.mxu0 0
  %750 = vmatprep.subr.bf16.mxu0 0
  %751 = vmatpush2.bf16.msra.mxu0 0
  %752 = vmatprep.subr.bf16.mxu0 0
  %753 = vmatpush2.bf16.msra.mxu0 0
  %754 = vmatprep.subr.bf16.mxu0 0
  %755 = vmatpush2.bf16.msra.mxu0 0
  %756 = vmatprep.mubr.bf16.mxu0 0
  %757 = vmatmul.mubr.bf16.gmra.mxu0 %v677
  %v758 = vpop.f32.mrf.mxu0
  %v759 = vadd.f32 %v662, %v758
  %v760 = vpop.f32.mrf.mxu0
  %v761 = vpop.f32.mrf.mxu0
  %v762 = vadd.f32 %v662, %v761
  %v763 = vpop.f32.mrf.mxu0
  %764 = vmatprep.mubr.bf16.mxu0 0
  %765 = vmatmul.mubr.bf16.gmra.mxu0 %v680
  %v766 = vpop.f32.mrf.mxu0
  %v767 = vadd.f32 %v662, %v766
  %v768 = vpop.f32.mrf.mxu0
  %v769 = vpop.f32.mrf.mxu0
  %v770 = vadd.f32 %v662, %v769
  %v771 = vpop.f32.mrf.mxu0
  %772 = vmatprep.mubr.bf16.mxu0 0
  %773 = vmatmul.mubr.bf16.gmra.mxu0 %v683
  %v774 = vpop.f32.mrf.mxu0
  %v775 = vadd.f32 %v662, %v774
  %v776 = vpop.f32.mrf.mxu0
  %v777 = vpop.f32.mrf.mxu0
  %v778 = vadd.f32 %v662, %v777
  %v779 = vpop.f32.mrf.mxu0
  %780 = vmatprep.mubr.bf16.mxu0 0
  %781 = vmatmul.mubr.bf16.gmra.mxu0 %v686
  %v782 = vpop.f32.mrf.mxu0
  %v783 = vadd.f32 %v662, %v782
  %v784 = vpop.f32.mrf.mxu0
  %v785 = vpop.f32.mrf.mxu0
  %v786 = vadd.f32 %v662, %v785
  %v787 = vpop.f32.mrf.mxu0
  %788 = vmatprep.mubr.bf16.mxu0 0
  %789 = vmatmul.mubr.bf16.gmra.mxu0 %v689
  %v790 = vpop.f32.mrf.mxu0
  %v791 = vadd.f32 %v662, %v790
  %v792 = vpop.f32.mrf.mxu0
  %v793 = vpop.f32.mrf.mxu0
  %v794 = vadd.f32 %v662, %v793
  %v795 = vpop.f32.mrf.mxu0
  %796 = vmatprep.mubr.bf16.mxu0 0
  %797 = vmatmul.mubr.bf16.gmra.mxu0 %v692
  %v798 = vpop.f32.mrf.mxu0
  %v799 = vadd.f32 %v662, %v798
  %v800 = vpop.f32.mrf.mxu0
  %v801 = vpop.f32.mrf.mxu0
  %v802 = vadd.f32 %v662, %v801
  %v803 = vpop.f32.mrf.mxu0
  %804 = vmatprep.mubr.bf16.mxu0 0
  %805 = vmatmul.mubr.bf16.gmra.mxu0 %v695
  %v806 = vpop.f32.mrf.mxu0
  %v807 = vadd.f32 %v662, %v806
  %v808 = vpop.f32.mrf.mxu0
  %v809 = vpop.f32.mrf.mxu0
  %v810 = vadd.f32 %v662, %v809
  %v811 = vpop.f32.mrf.mxu0
  %812 = vmatprep.mubr.bf16.mxu0 0
  %813 = vmatmul.mubr.bf16.gmra.mxu0 %v698
  %v814 = vpop.f32.mrf.mxu0
  %v815 = vadd.f32 %v662, %v814
  %v816 = vpop.f32.mrf.mxu0
  %v817 = vpop.f32.mrf.mxu0
  %v818 = vadd.f32 %v662, %v817
  %v819 = vpop.f32.mrf.mxu0
  %820 = vmatprep.mubr.bf16.mxu0 0
  %821 = vmatmul.mubr.bf16.gmra.mxu0 %v701
  %v822 = vpop.f32.mrf.mxu0
  %v823 = vadd.f32 %v662, %v822
  %v824 = vpop.f32.mrf.mxu0
  %v825 = vpop.f32.mrf.mxu0
  %v826 = vadd.f32 %v662, %v825
  %v827 = vpop.f32.mrf.mxu0
  %828 = vmatprep.mubr.bf16.mxu0 0
  %829 = vmatmul.mubr.bf16.gmra.mxu0 %v704
  %v830 = vpop.f32.mrf.mxu0
  %v831 = vadd.f32 %v662, %v830
  %v832 = vpop.f32.mrf.mxu0
  %v833 = vpop.f32.mrf.mxu0
  %v834 = vadd.f32 %v662, %v833
  %v835 = vpop.f32.mrf.mxu0
  %836 = vmatprep.mubr.bf16.mxu0 0
  %837 = vmatmul.mubr.bf16.gmra.mxu0 %v707
  %v838 = vpop.f32.mrf.mxu0
  %v839 = vadd.f32 %v662, %v838
  %v840 = vpop.f32.mrf.mxu0
  %v841 = vpop.f32.mrf.mxu0
  %v842 = vadd.f32 %v662, %v841
  %v843 = vpop.f32.mrf.mxu0
  %844 = vmatprep.mubr.bf16.mxu0 0
  %845 = vmatmul.mubr.bf16.gmra.mxu0 %v710
  %v846 = vpop.f32.mrf.mxu0
  %v847 = vadd.f32 %v662, %v846
  %v848 = vpop.f32.mrf.mxu0
  %v849 = vpop.f32.mrf.mxu0
  %v850 = vadd.f32 %v662, %v849
  %v851 = vpop.f32.mrf.mxu0
  %852 = vmatprep.mubr.bf16.mxu0 0
  %853 = vmatmul.mubr.bf16.gmra.mxu0 %v713
  %v854 = vpop.f32.mrf.mxu0
  %v855 = vadd.f32 %v662, %v854
  %v856 = vpop.f32.mrf.mxu0
  %v857 = vpop.f32.mrf.mxu0
  %v858 = vadd.f32 %v662, %v857
  %v859 = vpop.f32.mrf.mxu0
  %860 = vmatprep.mubr.bf16.mxu0 0
  %861 = vmatmul.mubr.bf16.gmra.mxu0 %v716
  %v862 = vpop.f32.mrf.mxu0
  %v863 = vadd.f32 %v662, %v862
  %v864 = vpop.f32.mrf.mxu0
  %v865 = vpop.f32.mrf.mxu0
  %v866 = vadd.f32 %v662, %v865
  %v867 = vpop.f32.mrf.mxu0
  %868 = vmatprep.mubr.bf16.mxu0 0
  %869 = vmatmul.mubr.bf16.gmra.mxu0 %v719
  %v870 = vpop.f32.mrf.mxu0
  %v871 = vadd.f32 %v662, %v870
  %v872 = vpop.f32.mrf.mxu0
  %v873 = vpop.f32.mrf.mxu0
  %v874 = vadd.f32 %v662, %v873
  %v875 = vpop.f32.mrf.mxu0
  %876 = vmatprep.mubr.bf16.mxu0 0
  %877 = vmatmul.mubr.bf16.gmra.mxu0 %v722
  %v878 = vpop.f32.mrf.mxu0
  %v879 = vadd.f32 %v662, %v878
  %v880 = vpop.f32.mrf.mxu0
  %v881 = vpop.f32.mrf.mxu0
  %v882 = vadd.f32 %v662, %v881
  %v883 = vpop.f32.mrf.mxu0
  %884 = vdwg.mxu0
  %vm885 = vcmask 15360
  %886 = vst.msk [vmem:[%s7] sm:$0xff] %vm885, %v759
  %887 = vst.msk [vmem:[%s7 + $0x8] sm:$0xff] %vm885, %v762
  %888 = vst.msk [vmem:[%s7 + $0x10] sm:$0xff] %vm885, %v767
  %889 = vst.msk [vmem:[%s7 + $0x18] sm:$0xff] %vm885, %v770
  %890 = vst.msk [vmem:[%s7 + $0x20] sm:$0xff] %vm885, %v775
  %891 = vst.msk [vmem:[%s7 + $0x28] sm:$0xff] %vm885, %v778
  %892 = vst.msk [vmem:[%s7 + $0x30] sm:$0xff] %vm885, %v783
  %893 = vst.msk [vmem:[%s7 + $0x38] sm:$0xff] %vm885, %v786
  %894 = vst.msk [vmem:[%s7 + $0x40] sm:$0xff] %vm885, %v791
  %895 = vst.msk [vmem:[%s7 + $0x48] sm:$0xff] %vm885, %v794
  %896 = vst.msk [vmem:[%s7 + $0x50] sm:$0xff] %vm885, %v799
  %897 = vst.msk [vmem:[%s7 + $0x58] sm:$0xff] %vm885, %v802
  %898 = vst.msk [vmem:[%s7 + $0x60] sm:$0xff] %vm885, %v807
  %899 = vst.msk [vmem:[%s7 + $0x68] sm:$0xff] %vm885, %v810
  %900 = vst.msk [vmem:[%s7 + $0x70] sm:$0xff] %vm885, %v815
  %901 = vst.msk [vmem:[%s7 + $0x78] sm:$0xff] %vm885, %v818
  %902 = vst.msk [vmem:[%s7 + $0x80] sm:$0xff] %vm885, %v823
  %903 = vst.msk [vmem:[%s7 + $0x88] sm:$0xff] %vm885, %v826
  %904 = vst.msk [vmem:[%s7 + $0x90] sm:$0xff] %vm885, %v831
  %905 = vst.msk [vmem:[%s7 + $0x98] sm:$0xff] %vm885, %v834
  %906 = vst.msk [vmem:[%s7 + $0xa0] sm:$0xff] %vm885, %v839
  %907 = vst.msk [vmem:[%s7 + $0xa8] sm:$0xff] %vm885, %v842
  %908 = vst.msk [vmem:[%s7 + $0xb0] sm:$0xff] %vm885, %v847
  %909 = vst.msk [vmem:[%s7 + $0xb8] sm:$0xff] %vm885, %v850
  %910 = vst.msk [vmem:[%s7 + $0xc0] sm:$0xff] %vm885, %v855
  %911 = vst.msk [vmem:[%s7 + $0xc8] sm:$0xff] %vm885, %v858
  %912 = vst.msk [vmem:[%s7 + $0xd0] sm:$0xff] %vm885, %v863
  %913 = vst.msk [vmem:[%s7 + $0xd8] sm:$0xff] %vm885, %v866
  %914 = vst.msk [vmem:[%s7 + $0xe0] sm:$0xff] %vm885, %v871
  %915 = vst.msk [vmem:[%s7 + $0xe8] sm:$0xff] %vm885, %v874
  %916 = vst.msk [vmem:[%s7 + $0xf0] sm:$0xff] %vm885, %v879
  %917 = vst.msk [vmem:[%s7 + $0xf8] sm:$0xff] %vm885, %v882
  // Predicated region
  $region30: #{phishing_model_forward.1} parent=0 // pred_check
    _
  $region31: #{phishing_model_forward.1} parent=0 // pred_check_branch
    %919 = sbr.rel (0) target = $region33
  $region32: #{phishing_model_forward.1} parent=0 // pred_region
    _
  $region33: #{phishing_model_forward.1} parent=0 // pred_fallthru
    _
  // Predicated region
  $region34: #{phishing_model_forward.1} parent=0 // pred_check
    _
  $region35: #{phishing_model_forward.1} parent=0 // pred_check_branch
    %921 = sbr.rel (0) target = $region37
  $region36: #{phishing_model_forward.1} parent=0 // pred_region
    _
  $region37: #{phishing_model_forward.1} parent=0 // pred_fallthru
    _

</llo_original>
